<compile_context>
chip_gen: v7x
topology: tpu7x:2x2x1
jax: 0.10.0
libtpu: 0.0.40
codegen_flags: <defaults>
</compile_context>

<pallas_src>
import jax
import jax.numpy as jnp
from jax.experimental import pallas as pl
from jax.experimental.pallas import tpu as pltpu


def _round_up(x: int, m: int) -> int:
    return ((x + m - 1) // m) * m


def _cdiv(a: int, b: int) -> int:
    return (a + b - 1) // b


def _gcn_two_matmul_kernel(x_ref, wT_ref, a_ref, o_ref, y_ref):
    # Cache y = x_tile @ W.T in VMEM scratch: computed once per row tile
    # (first M tile) and reused for every output-column tile j.
    @pl.when(pl.program_id(1) == 0)
    def _():
        y_ref[...] = jnp.dot(x_ref[...], wT_ref[...],
                             preferred_element_type=jnp.float32)

    # out_tile = y @ A_tile with f32 MXU accumulation (tracks torch's f32
    # sparse.mm); no explicit astype on the adjacency operand.
    o_ref[...] = jnp.dot(y_ref[...], a_ref[...],
                         preferred_element_type=jnp.float32).astype(o_ref.dtype)


def _gcn_fused_kernel(x_ref, b_ref, o_ref):
    # out_tile = x_tile @ B, where B = W.T @ A_hat was folded in the wrapper.
    o_ref[...] = jnp.dot(x_ref[...], b_ref[...],
                         preferred_element_type=jnp.float32).astype(o_ref.dtype)


def gcn_conv(x, w, a_dense, *, tn=256, tm=512, fuse="auto",
             single_block="auto", vmem_limit_bytes=None):
    """GCNConv forward: (x @ w.T) @ a_dense.

    x:       (N, F_in)      node features
    w:       (F_out, F_in)  nn.Linear weight (no bias)
    a_dense: (F_out, M)     densified adjacency_hat
    returns: (N, M)
    """
    N, F_in = x.shape
    F_out, f_in_w = w.shape
    assert f_in_w == F_in, (w.shape, x.shape)
    f_out_a, M = a_dense.shape
    assert f_out_a == F_out, (a_dense.shape, w.shape)

    out_dtype = x.dtype
    o_bpe = jnp.dtype(out_dtype).itemsize
    x_bpe = jnp.dtype(x.dtype).itemsize
    w_bpe = jnp.dtype(w.dtype).itemsize
    a_bpe = jnp.dtype(a_dense.dtype).itemsize

    # Algebraic fusion (x @ W.T) @ A == x @ (W.T @ A) when it reduces work.
    if fuse == "auto":
        fuse = F_in * M < F_in * F_out + F_out * M
    fuse = bool(fuse)

    # Generation-aware VMEM cap (v5e/v6e: 128 MiB, v7x: 64 MiB per TC).
    try:
        vmem_phys = int(pltpu.get_tpu_info().vmem_capacity_bytes)
    except Exception:
        vmem_phys = 64 << 20  # conservative (v7x) fallback
    vmem_cap = int(vmem_phys * 0.8)

    def _vmem_est(tn_, tm_):
        if fuse:
            return (2 * tn_ * F_in * x_bpe + 2 * F_in * tm_ * o_bpe
                    + 2 * tn_ * tm_ * o_bpe)
        return (2 * tn_ * F_in * x_bpe + 2 * F_in * F_out * w_bpe
                + 2 * F_out * tm_ * a_bpe + 2 * tn_ * tm_ * o_bpe
                + tn_ * F_out * 4)  # y-cache scratch (f32)

    # ---- tile selection -----------------------------------------------------
    footprint = (N * F_in * x_bpe + F_in * F_out * w_bpe
                 + F_out * M * a_bpe + N * M * o_bpe)
    if single_block == "auto":
        single_block = footprint <= (4 << 20)
    if single_block:
        # Everything fits in a few MiB of VMEM: one full-extent block
        # (grid (1,1)) — per-grid-step pipeline overhead would dominate.
        tn_eff, tm_eff = N, M
    else:
        tn_eff = min(_round_up(max(tn, 8), 8), _round_up(N, 8))
        tm_eff = min(_round_up(max(tm, 128), 128), _round_up(M, 128))
        # Keep both v7x TensorCores busy: axis 0 is the megacore-parallel axis.
        if _cdiv(N, tn_eff) == 1 and N > 8:
            tn_eff = _round_up(_cdiv(N, 2), 8)
        # Shrink the column tile if the estimate would blow the VMEM budget.
        while _vmem_est(tn_eff, tm_eff) > vmem_cap // 2 and tm_eff > 128:
            tm_eff -= 128

    grid = (_cdiv(N, tn_eff), _cdiv(M, tm_eff))

    # No explicit padding: Pallas masks edge blocks.  Safe because the
    # reduction dims (F_in, F_out) stay full-extent in every BlockSpec.
    x_spec = pl.BlockSpec((tn_eff, F_in), lambda i, j: (i, 0))
    out_spec = pl.BlockSpec((tn_eff, tm_eff), lambda i, j: (i, j))
    out_shape = jax.ShapeDtypeStruct((N, M), out_dtype)

    # ---- cost estimate & compiler params ------------------------------------
    if fuse:
        flops = 2.0 * N * F_in * M
        bytes_accessed = (N * F_in * x_bpe + F_in * M * o_bpe + N * M * o_bpe)
        semantics = ("parallel", "parallel")
    else:
        # With the y-cache, matmul1 is issued once per row tile.
        flops = 2.0 * N * F_in * F_out + 2.0 * N * F_out * M
        bytes_accessed = (N * F_in * x_bpe + F_in * F_out * w_bpe
                          + F_out * M * a_bpe + N * M * o_bpe)
        semantics = ("parallel", "arbitrary")  # j must stay sequential per core

    vmem_est = _vmem_est(tn_eff, tm_eff)
    if vmem_limit_bytes is None:
        vmem_limit_bytes = min(max(2 * vmem_est + (8 << 20), 32 << 20), vmem_cap)

    cost = pl.CostEstimate(flops=int(flops), transcendentals=0,
                           bytes_accessed=int(bytes_accessed))
    cparams = pltpu.CompilerParams(
        dimension_semantics=semantics,
        vmem_limit_bytes=int(vmem_limit_bytes))

    if fuse:
        # Fold B = W.T @ A_hat once in the wrapper (f32 accumulate); the
        # kernel then runs the single remaining matmul x @ B.
        b = jnp.dot(w.T.astype(jnp.float32), a_dense.astype(jnp.float32),
                    preferred_element_type=jnp.float32).astype(out_dtype)
        return pl.pallas_call(
            _gcn_fused_kernel,
            out_shape=out_shape,
            grid=grid,
            in_specs=[x_spec,
                      pl.BlockSpec((F_in, tm_eff), lambda i, j: (0, j))],
            out_specs=out_spec,
            compiler_params=cparams,
            cost_estimate=cost,
        )(x, b)

    wT = w.T  # (F_in, F_out): lane dim contiguous for the MXU
    return pl.pallas_call(
        _gcn_two_matmul_kernel,
        out_shape=out_shape,
        grid=grid,
        in_specs=[x_spec,
                  pl.BlockSpec((F_in, F_out), lambda i, j: (0, 0)),
                  pl.BlockSpec((F_out, tm_eff), lambda i, j: (0, j))],
        out_specs=out_spec,
        scratch_shapes=[pltpu.VMEM((tn_eff, F_out), jnp.float32)],
        compiler_params=cparams,
        cost_estimate=cost,
    )(x, wT, a_dense)


if __name__ == "__main__":
    # Small shapes consistent with the module's forward:
    #   x: (N, in_features), W: (out_features, in_features),
    #   adjacency_hat: (out_features, M).  Non-multiples of tile sizes to
    #   exercise the edge-block masking path as well.
    N, IN_F, OUT_F, M = 300, 24, 40, 200

    key = jax.random.PRNGKey(0)
    kx, kw, ka, km = jax.random.split(key, 4)

    x = jax.random.normal(kx, (N, IN_F), dtype=jnp.float32)

    # nn.Linear-style init: uniform(-1/sqrt(in_features), 1/sqrt(in_features))
    bound = 1.0 / (IN_F ** 0.5)
    w = jax.random.uniform(kw, (OUT_F, IN_F), dtype=jnp.float32,
                           minval=-bound, maxval=bound)

    # Synthetic sparse adjacency_hat, densified (COO -> dense): ~25% nonzeros.
    a_vals = jax.random.normal(ka, (OUT_F, M), dtype=jnp.float32)
    a_mask = (jax.random.uniform(km, (OUT_F, M)) < 0.25).astype(jnp.float32)
    a_dense = a_vals * a_mask

    ref = (x @ w.T) @ a_dense

    # 1) Two-matmul kernel, single-block fast path (shapes fit in VMEM).
    out_small = jax.block_until_ready(gcn_conv(x, w, a_dense, fuse=False))
    assert out_small.shape == (N, M)
    assert jnp.allclose(out_small, ref, atol=1e-3, rtol=1e-3), (
        float(jnp.max(jnp.abs(out_small - ref))))

    # 2) Two-matmul kernel, forced tiled path (y-cache scratch + edge masking).
    out_tiled = jax.block_until_ready(
        gcn_conv(x, w, a_dense, fuse=False, single_block=False))
    assert out_tiled.shape == (N, M)
    assert jnp.allclose(out_tiled, ref, atol=1e-3, rtol=1e-3), (
        float(jnp.max(jnp.abs(out_tiled - ref))))

    # 3) Fused path x @ (W.T @ A_hat); same math, slightly looser tolerance
    #    for the re-association.
    out_fused = jax.block_until_ready(gcn_conv(x, w, a_dense, fuse=True))
    assert out_fused.shape == (N, M)
    assert jnp.allclose(out_fused, ref, atol=1e-2, rtol=1e-2), (
        float(jnp.max(jnp.abs(out_fused - ref))))

    print("KERNEL_OK")
</pallas_src>

<mosaic_0001>
module attributes {stable_mosaic.version = 11 : i64} {
  func.func @_gcn_two_matmul_kernel(%arg0: i32, %arg1: i32, %arg2: memref<300x24xf32, #tpu.memory_space<vmem>>, %arg3: memref<24x40xf32, #tpu.memory_space<vmem>>, %arg4: memref<40x200xf32, #tpu.memory_space<vmem>>, %arg5: memref<300x200xf32, #tpu.memory_space<vmem>>, %arg6: memref<300x40xf32, #tpu.memory_space<vmem>>) attributes {dimension_semantics = [#tpu.dimension_semantics<parallel>, #tpu.dimension_semantics<arbitrary>], iteration_bounds = array<i64: 1, 1>, scalar_prefetch = 0 : i64, scratch_operands = 1 : i64, tpu.core_type = #tpu.core_type<tc>, window_params = [{transform_indices = @transform_0, window_bounds = array<i64: 300, 24>}, {pipeline_mode = #tpu.pipeline_mode<synchronous>, transform_indices = @transform_1, window_bounds = array<i64: 24, 40>}, {transform_indices = @transform_2, window_bounds = array<i64: 40, 200>}, {transform_indices = @transform_3, window_bounds = array<i64: 300, 200>}]} {
    %c0_i32 = arith.constant 0 : i32
    %0 = arith.cmpi eq, %arg1, %c0_i32 : i32
    %1 = arith.extui %0 : i1 to i32
    %c0_i32_0 = arith.constant 0 : i32
    %2 = arith.cmpi ne, %1, %c0_i32_0 : i32
    scf.if %2 {
      %c0_6 = arith.constant 0 : index
      %c0_7 = arith.constant 0 : index
      %7 = vector.load %arg2[%c0_6, %c0_7] : memref<300x24xf32, #tpu.memory_space<vmem>>, vector<300x24xf32>
      %c0_8 = arith.constant 0 : index
      %c0_9 = arith.constant 0 : index
      %8 = vector.load %arg3[%c0_8, %c0_9] : memref<24x40xf32, #tpu.memory_space<vmem>>, vector<24x40xf32>
      %cst_10 = arith.constant dense<0.000000e+00> : vector<300x40xf32>
      %9 = tpu.matmul %7, %8, %cst_10 {dimension_numbers = #tpu.dot_dimension_numbers<[1], [0], [0], [1], [0, 0, 1, 1], [], []>} : vector<300x24xf32>, vector<24x40xf32>, vector<300x40xf32> -> vector<300x40xf32>
      %c0_11 = arith.constant 0 : index
      %c0_12 = arith.constant 0 : index
      %10 = vector.load %arg6[%c0_11, %c0_12] : memref<300x40xf32, #tpu.memory_space<vmem>>, vector<300x40xf32>
      tpu.vector_store %arg6[%c0_11, %c0_12], %9 {strides = array<i32>} : memref<300x40xf32, #tpu.memory_space<vmem>>, vector<300x40xf32>,
    } else {
    }
    %c0 = arith.constant 0 : index
    %c0_1 = arith.constant 0 : index
    %3 = vector.load %arg6[%c0, %c0_1] : memref<300x40xf32, #tpu.memory_space<vmem>>, vector<300x40xf32>
    %c0_2 = arith.constant 0 : index
    %c0_3 = arith.constant 0 : index
    %4 = vector.load %arg4[%c0_2, %c0_3] : memref<40x200xf32, #tpu.memory_space<vmem>>, vector<40x200xf32>
    %cst = arith.constant dense<0.000000e+00> : vector<300x200xf32>
    %5 = tpu.matmul %3, %4, %cst {dimension_numbers = #tpu.dot_dimension_numbers<[1], [0], [0], [1], [0, 0, 1, 1], [], []>} : vector<300x40xf32>, vector<40x200xf32>, vector<300x200xf32> -> vector<300x200xf32>
    %c0_4 = arith.constant 0 : index
    %c0_5 = arith.constant 0 : index
    %6 = vector.load %arg5[%c0_4, %c0_5] : memref<300x200xf32, #tpu.memory_space<vmem>>, vector<300x200xf32>
    tpu.vector_store %arg5[%c0_4, %c0_5], %5 {strides = array<i32>} : memref<300x200xf32, #tpu.memory_space<vmem>>, vector<300x200xf32>,
    return
  }
  func.func @transform_0(%arg0: i32, %arg1: i32) -> (i32, i32) {
    %c0_i32 = arith.constant 0 : i32
    %c0_i32_0 = arith.constant 0 : i32
    return %arg0, %c0_i32 : i32, i32
  }
  func.func @transform_1(%arg0: i32, %arg1: i32) -> (i32, i32) {
    %c0_i32 = arith.constant 0 : i32
    %c0_i32_0 = arith.constant 0 : i32
    %c0_i32_1 = arith.constant 0 : i32
    return %c0_i32, %c0_i32_0 : i32, i32
  }
  func.func @transform_2(%arg0: i32, %arg1: i32) -> (i32, i32) {
    %c0_i32 = arith.constant 0 : i32
    %c0_i32_0 = arith.constant 0 : i32
    return %c0_i32, %arg1 : i32, i32
  }
  func.func @transform_3(%arg0: i32, %arg1: i32) -> (i32, i32) {
    %c0_i32 = arith.constant 0 : i32
    return %arg0, %arg1 : i32, i32
  }
}

</mosaic_0001>

<llo_original>
// kernel: tpu_custom_call.1
$region0: #{tpu_custom_call.1}
  #allocation0 [shape = 'u32[]', space=smem, size = 0x4, offset = 0x4, fixed_abs, tag = 'smem constant byte address 0x4 - core index']
  #allocation1 [shape = 'u32[144,128]{1,0:T(1,128)}', space=vmem, size = 0x12000, scoped, tag = 'internal scratch']
  #allocation2 [shape = 'f32[300,40]{1,0:T(8,128)}', space=vmem, size = 0x26000, scoped, tag = 'scratch operand']
  %s0 = inlined_call_operand.vmem [shape: f32[300,24], index: 0, kind: input, shape index: {}]
  %s1 = inlined_call_operand.vmem [shape: f32[24,40], index: 1, kind: input, shape index: {}]
  %s2 = inlined_call_operand.vmem [shape: f32[40,200], index: 2, kind: input, shape index: {}]
  %s3 = inlined_call_operand.vmem [shape: f32[300,200], index: 3, kind: output, shape index: {}]
  %s4 = sld [smem:[#allocation0]]
  $region26: #{tpu_custom_call.1} parent=0
    _
  %s6 = ssub.s32 1, %s4
  %s7 = scalar_select 0, %s6, %s4
  // Predicated region
  $region2: #{tpu_custom_call.1} parent=0 // pred_check
    _
  $region3: #{tpu_custom_call.1} parent=0 // pred_check_branch
    %9 = sbr.rel (0) target = $region5
  $region4: #{tpu_custom_call.1} parent=0 // pred_region
    _
  $region5: #{tpu_custom_call.1} parent=0 // pred_fallthru
    _
  // Predicated region
  $region6: #{tpu_custom_call.1} parent=0 // pred_check
    _
  $region7: #{tpu_custom_call.1} parent=0 // pred_check_branch
    %11 = sbr.rel (0) target = $region9
  $region8: #{tpu_custom_call.1} parent=0 // pred_region
    _
  $region9: #{tpu_custom_call.1} parent=0 // pred_fallthru
    _
  // Predicated region
  $region10: #{tpu_custom_call.1} parent=0 // pred_check
    _
  $region11: #{tpu_custom_call.1} parent=0 // pred_check_branch
    %13 = sbr.rel (0) target = $region13
  $region12: #{tpu_custom_call.1} parent=0 // pred_region
    _
  $region13: #{tpu_custom_call.1} parent=0 // pred_fallthru
    _
  %p14 = scmp.eq.s32.totalorder 0, 0
  // Predicated region
  $region14: #{tpu_custom_call.1} parent=0 // pred_check
    %p15 = pneg %p14
  $region15: #{tpu_custom_call.1} parent=0 // pred_check_branch
    %17 = sbr.rel (%p15) target = $region17
  $region16: #{tpu_custom_call.1} parent=0 // pred_region
    %v18 = vld [vmem:[%s0] sm:$0xff]
    %v19 = vld [vmem:[%s0 + $0x8] sm:$0xff]
    %v20 = vld [vmem:[%s0 + $0x10] sm:$0xff]
    %v21 = vld [vmem:[%s0 + $0x18] sm:$0xff]
    %v22 = vld [vmem:[%s0 + $0x20] sm:$0xff]
    %v23 = vld [vmem:[%s0 + $0x28] sm:$0xff]
    %v24 = vld [vmem:[%s0 + $0x30] sm:$0xff]
    %v25 = vld [vmem:[%s0 + $0x38] sm:$0xff]
    %v26 = vld [vmem:[%s0 + $0x40] sm:$0xff]
    %v27 = vld [vmem:[%s0 + $0x48] sm:$0xff]
    %v28 = vld [vmem:[%s0 + $0x50] sm:$0xff]
    %v29 = vld [vmem:[%s0 + $0x58] sm:$0xff]
    %v30 = vld [vmem:[%s0 + $0x60] sm:$0xff]
    %v31 = vld [vmem:[%s0 + $0x68] sm:$0xff]
    %v32 = vld [vmem:[%s0 + $0x70] sm:$0xff]
    %v33 = vld [vmem:[%s0 + $0x78] sm:$0xff]
    %v34 = vld [vmem:[%s0 + $0x80] sm:$0xff]
    %v35 = vld [vmem:[%s0 + $0x88] sm:$0xff]
    %v36 = vld [vmem:[%s0 + $0x90] sm:$0xff]
    %v37 = vld [vmem:[%s0 + $0x98] sm:$0xff]
    %v38 = vld [vmem:[%s0 + $0xa0] sm:$0xff]
    %v39 = vld [vmem:[%s0 + $0xa8] sm:$0xff]
    %v40 = vld [vmem:[%s0 + $0xb0] sm:$0xff]
    %v41 = vld [vmem:[%s0 + $0xb8] sm:$0xff]
    %v42 = vld [vmem:[%s0 + $0xc0] sm:$0xff]
    %v43 = vld [vmem:[%s0 + $0xc8] sm:$0xff]
    %v44 = vld [vmem:[%s0 + $0xd0] sm:$0xff]
    %v45 = vld [vmem:[%s0 + $0xd8] sm:$0xff]
    %v46 = vld [vmem:[%s0 + $0xe0] sm:$0xff]
    %v47 = vld [vmem:[%s0 + $0xe8] sm:$0xff]
    %v48 = vld [vmem:[%s0 + $0xf0] sm:$0xff]
    %v49 = vld [vmem:[%s0 + $0xf8] sm:$0xff]
    %v50 = vld [vmem:[%s0 + $0x100] sm:$0xff]
    %v51 = vld [vmem:[%s0 + $0x108] sm:$0xff]
    %v52 = vld [vmem:[%s0 + $0x110] sm:$0xff]
    %v53 = vld [vmem:[%s0 + $0x118] sm:$0xff]
    %v54 = vld [vmem:[%s0 + $0x120] sm:$0xff]
    %v55 = vld [vmem:[%s0 + $0x128] sm:$0xf]
    %v56 = vld [vmem:[%s1] sm:$0xff]
    %v57 = vld [vmem:[%s1 + $0x8] sm:$0xff]
    %v58 = vld [vmem:[%s1 + $0x10] sm:$0xff]
    %vm59 = vcmask 195584
    %v61 = vsel %vm59, %v18, 0
    %v64 = vsel %vm59, %v19, 0
    %v67 = vsel %vm59, %v20, 0
    %v70 = vsel %vm59, %v21, 0
    %v73 = vsel %vm59, %v22, 0
    %v76 = vsel %vm59, %v23, 0
    %v79 = vsel %vm59, %v24, 0
    %v82 = vsel %vm59, %v25, 0
    %v85 = vsel %vm59, %v26, 0
    %v88 = vsel %vm59, %v27, 0
    %v91 = vsel %vm59, %v28, 0
    %v94 = vsel %vm59, %v29, 0
    %v97 = vsel %vm59, %v30, 0
    %v100 = vsel %vm59, %v31, 0
    %v103 = vsel %vm59, %v32, 0
    %v106 = vsel %vm59, %v33, 0
    %v109 = vsel %vm59, %v34, 0
    %v112 = vsel %vm59, %v35, 0
    %v115 = vsel %vm59, %v36, 0
    %v118 = vsel %vm59, %v37, 0
    %v121 = vsel %vm59, %v38, 0
    %v124 = vsel %vm59, %v39, 0
    %v127 = vsel %vm59, %v40, 0
    %v130 = vsel %vm59, %v41, 0
    %v133 = vsel %vm59, %v42, 0
    %v136 = vsel %vm59, %v43, 0
    %v139 = vsel %vm59, %v44, 0
    %v142 = vsel %vm59, %v45, 0
    %v145 = vsel %vm59, %v46, 0
    %v148 = vsel %vm59, %v47, 0
    %v151 = vsel %vm59, %v48, 0
    %v154 = vsel %vm59, %v49, 0
    %v157 = vsel %vm59, %v50, 0
    %v160 = vsel %vm59, %v51, 0
    %v163 = vsel %vm59, %v52, 0
    %v166 = vsel %vm59, %v53, 0
    %v169 = vsel %vm59, %v54, 0
    %v172 = vsel %vm59, %v55, 0
    %174 = vmatprep.subr.mxu0 0.0
    %175 = vmatpush1.msra.mxu0 %v56
    %176 = vmatprep.subr.mxu0 0.0
    %177 = vmatpush1.msra.mxu0 %v57
    %178 = vmatprep.subr.mxu0 0.0
    %179 = vmatpush1.msra.mxu0 %v58
    %180 = vmatprep.subr.mxu0 0.0
    %181 = vmatpush1.msra.mxu0 0.0
    %182 = vmatprep.subr.mxu0 0.0
    %183 = vmatpush1.msra.mxu0 0.0
    %184 = vmatprep.subr.mxu0 0.0
    %185 = vmatpush1.msra.mxu0 0.0
    %186 = vmatprep.subr.mxu0 0.0
    %187 = vmatpush1.msra.mxu0 0.0
    %188 = vmatprep.subr.mxu0 0.0
    %189 = vmatpush1.msra.mxu0 0.0
    %190 = vmatprep.subr.mxu0 0.0
    %191 = vmatpush1.msra.mxu0 0.0
    %192 = vmatprep.subr.mxu0 0.0
    %193 = vmatpush1.msra.mxu0 0.0
    %194 = vmatprep.subr.mxu0 0.0
    %195 = vmatpush1.msra.mxu0 0.0
    %196 = vmatprep.subr.mxu0 0.0
    %197 = vmatpush1.msra.mxu0 0.0
    %198 = vmatprep.subr.mxu0 0.0
    %199 = vmatpush1.msra.mxu0 0.0
    %200 = vmatprep.subr.mxu0 0.0
    %201 = vmatpush1.msra.mxu0 0.0
    %202 = vmatprep.subr.mxu0 0.0
    %203 = vmatpush1.msra.mxu0 0.0
    %204 = vmatprep.subr.mxu0 0.0
    %205 = vmatpush1.msra.mxu0 0.0
    %206 = vmatprep.subr.mxu0 0.0
    %207 = vmatpush1.msra.mxu0 0.0
    %208 = vmatprep.subr.mxu0 0.0
    %209 = vmatpush1.msra.mxu0 0.0
    %210 = vmatprep.subr.mxu0 0.0
    %211 = vmatpush1.msra.mxu0 0.0
    %212 = vmatprep.subr.mxu0 0.0
    %213 = vmatpush1.msra.mxu0 0.0
    %214 = vmatprep.subr.mxu0 0.0
    %215 = vmatpush1.msra.mxu0 0.0
    %216 = vmatprep.subr.mxu0 0.0
    %217 = vmatpush1.msra.mxu0 0.0
    %218 = vmatprep.subr.mxu0 0.0
    %219 = vmatpush1.msra.mxu0 0.0
    %220 = vmatprep.subr.mxu0 0.0
    %221 = vmatpush1.msra.mxu0 0.0
    %222 = vmatprep.subr.mxu0 0.0
    %223 = vmatpush1.msra.mxu0 0.0
    %224 = vmatprep.subr.mxu0 0.0
    %225 = vmatpush1.msra.mxu0 0.0
    %226 = vmatprep.subr.mxu0 0.0
    %227 = vmatpush1.msra.mxu0 0.0
    %228 = vmatprep.subr.mxu0 0.0
    %229 = vmatpush1.msra.mxu0 0.0
    %230 = vmatprep.subr.mxu0 0.0
    %231 = vmatpush1.msra.mxu0 0.0
    %232 = vmatprep.subr.mxu0 0.0
    %233 = vmatpush1.msra.mxu0 0.0
    %234 = vmatprep.subr.mxu0 0.0
    %235 = vmatpush1.msra.mxu0 0.0
    %236 = vmatprep.subr.mxu0 0.0
    %237 = vmatpush1.msra.mxu0 0.0
    %238 = vmatprep.mubr.f32.mxu0 0.0
    %239 = vmatmul.mubr.f32.gmra.mrb[0].mxu0 %v61
    %v240 = vpop.f32.mrb[0].mxu0
    %v241 = vadd.f32 0.0, %v240
    %v242 = vpop.f32.mrb[0].mxu0
    %243 = vmatprep.mubr.f32.mxu0 0.0
    %244 = vmatmul.mubr.f32.gmra.mrb[0].mxu0 %v64
    %v245 = vpop.f32.mrb[0].mxu0
    %v246 = vadd.f32 0.0, %v245
    %v247 = vpop.f32.mrb[0].mxu0
    %248 = vmatprep.mubr.f32.mxu0 0.0
    %249 = vmatmul.mubr.f32.gmra.mrb[0].mxu0 %v67
    %v250 = vpop.f32.mrb[0].mxu0
    %v251 = vadd.f32 0.0, %v250
    %v252 = vpop.f32.mrb[0].mxu0
    %253 = vmatprep.mubr.f32.mxu0 0.0
    %254 = vmatmul.mubr.f32.gmra.mrb[0].mxu0 %v70
    %v255 = vpop.f32.mrb[0].mxu0
    %v256 = vadd.f32 0.0, %v255
    %v257 = vpop.f32.mrb[0].mxu0
    %258 = vmatprep.mubr.f32.mxu0 0.0
    %259 = vmatmul.mubr.f32.gmra.mrb[0].mxu0 %v73
    %v260 = vpop.f32.mrb[0].mxu0
    %v261 = vadd.f32 0.0, %v260
    %v262 = vpop.f32.mrb[0].mxu0
    %263 = vmatprep.mubr.f32.mxu0 0.0
    %264 = vmatmul.mubr.f32.gmra.mrb[0].mxu0 %v76
    %v265 = vpop.f32.mrb[0].mxu0
    %v266 = vadd.f32 0.0, %v265
    %v267 = vpop.f32.mrb[0].mxu0
    %268 = vmatprep.mubr.f32.mxu0 0.0
    %269 = vmatmul.mubr.f32.gmra.mrb[0].mxu0 %v79
    %v270 = vpop.f32.mrb[0].mxu0
    %v271 = vadd.f32 0.0, %v270
    %v272 = vpop.f32.mrb[0].mxu0
    %273 = vmatprep.mubr.f32.mxu0 0.0
    %274 = vmatmul.mubr.f32.gmra.mrb[0].mxu0 %v82
    %v275 = vpop.f32.mrb[0].mxu0
    %v276 = vadd.f32 0.0, %v275
    %v277 = vpop.f32.mrb[0].mxu0
    %278 = vmatprep.mubr.f32.mxu0 0.0
    %279 = vmatmul.mubr.f32.gmra.mrb[0].mxu0 %v85
    %v280 = vpop.f32.mrb[0].mxu0
    %v281 = vadd.f32 0.0, %v280
    %v282 = vpop.f32.mrb[0].mxu0
    %283 = vmatprep.mubr.f32.mxu0 0.0
    %284 = vmatmul.mubr.f32.gmra.mrb[0].mxu0 %v88
    %v285 = vpop.f32.mrb[0].mxu0
    %v286 = vadd.f32 0.0, %v285
    %v287 = vpop.f32.mrb[0].mxu0
    %288 = vmatprep.mubr.f32.mxu0 0.0
    %289 = vmatmul.mubr.f32.gmra.mrb[0].mxu0 %v91
    %v290 = vpop.f32.mrb[0].mxu0
    %v291 = vadd.f32 0.0, %v290
    %v292 = vpop.f32.mrb[0].mxu0
    %293 = vmatprep.mubr.f32.mxu0 0.0
    %294 = vmatmul.mubr.f32.gmra.mrb[0].mxu0 %v94
    %v295 = vpop.f32.mrb[0].mxu0
    %v296 = vadd.f32 0.0, %v295
    %v297 = vpop.f32.mrb[0].mxu0
    %298 = vmatprep.mubr.f32.mxu0 0.0
    %299 = vmatmul.mubr.f32.gmra.mrb[0].mxu0 %v97
    %v300 = vpop.f32.mrb[0].mxu0
    %v301 = vadd.f32 0.0, %v300
    %v302 = vpop.f32.mrb[0].mxu0
    %303 = vmatprep.mubr.f32.mxu0 0.0
    %304 = vmatmul.mubr.f32.gmra.mrb[0].mxu0 %v100
    %v305 = vpop.f32.mrb[0].mxu0
    %v306 = vadd.f32 0.0, %v305
    %v307 = vpop.f32.mrb[0].mxu0
    %308 = vmatprep.mubr.f32.mxu0 0.0
    %309 = vmatmul.mubr.f32.gmra.mrb[0].mxu0 %v103
    %v310 = vpop.f32.mrb[0].mxu0
    %v311 = vadd.f32 0.0, %v310
    %v312 = vpop.f32.mrb[0].mxu0
    %313 = vmatprep.mubr.f32.mxu0 0.0
    %314 = vmatmul.mubr.f32.gmra.mrb[0].mxu0 %v106
    %v315 = vpop.f32.mrb[0].mxu0
    %v316 = vadd.f32 0.0, %v315
    %v317 = vpop.f32.mrb[0].mxu0
    %318 = vmatprep.mubr.f32.mxu0 0.0
    %319 = vmatmul.mubr.f32.gmra.mrb[0].mxu0 %v109
    %v320 = vpop.f32.mrb[0].mxu0
    %v321 = vadd.f32 0.0, %v320
    %v322 = vpop.f32.mrb[0].mxu0
    %323 = vmatprep.mubr.f32.mxu0 0.0
    %324 = vmatmul.mubr.f32.gmra.mrb[0].mxu0 %v112
    %v325 = vpop.f32.mrb[0].mxu0
    %v326 = vadd.f32 0.0, %v325
    %v327 = vpop.f32.mrb[0].mxu0
    %328 = vmatprep.mubr.f32.mxu0 0.0
    %329 = vmatmul.mubr.f32.gmra.mrb[0].mxu0 %v115
    %v330 = vpop.f32.mrb[0].mxu0
    %v331 = vadd.f32 0.0, %v330
    %v332 = vpop.f32.mrb[0].mxu0
    %333 = vmatprep.mubr.f32.mxu0 0.0
    %334 = vmatmul.mubr.f32.gmra.mrb[0].mxu0 %v118
    %v335 = vpop.f32.mrb[0].mxu0
    %v336 = vadd.f32 0.0, %v335
    %v337 = vpop.f32.mrb[0].mxu0
    %338 = vmatprep.mubr.f32.mxu0 0.0
    %339 = vmatmul.mubr.f32.gmra.mrb[0].mxu0 %v121
    %v340 = vpop.f32.mrb[0].mxu0
    %v341 = vadd.f32 0.0, %v340
    %v342 = vpop.f32.mrb[0].mxu0
    %343 = vmatprep.mubr.f32.mxu0 0.0
    %344 = vmatmul.mubr.f32.gmra.mrb[0].mxu0 %v124
    %v345 = vpop.f32.mrb[0].mxu0
    %v346 = vadd.f32 0.0, %v345
    %v347 = vpop.f32.mrb[0].mxu0
    %348 = vmatprep.mubr.f32.mxu0 0.0
    %349 = vmatmul.mubr.f32.gmra.mrb[0].mxu0 %v127
    %v350 = vpop.f32.mrb[0].mxu0
    %v351 = vadd.f32 0.0, %v350
    %v352 = vpop.f32.mrb[0].mxu0
    %353 = vmatprep.mubr.f32.mxu0 0.0
    %354 = vmatmul.mubr.f32.gmra.mrb[0].mxu0 %v130
    %v355 = vpop.f32.mrb[0].mxu0
    %v356 = vadd.f32 0.0, %v355
    %v357 = vpop.f32.mrb[0].mxu0
    %358 = vmatprep.mubr.f32.mxu0 0.0
    %359 = vmatmul.mubr.f32.gmra.mrb[0].mxu0 %v133
    %v360 = vpop.f32.mrb[0].mxu0
    %v361 = vadd.f32 0.0, %v360
    %v362 = vpop.f32.mrb[0].mxu0
    %363 = vmatprep.mubr.f32.mxu0 0.0
    %364 = vmatmul.mubr.f32.gmra.mrb[0].mxu0 %v136
    %v365 = vpop.f32.mrb[0].mxu0
    %v366 = vadd.f32 0.0, %v365
    %v367 = vpop.f32.mrb[0].mxu0
    %368 = vmatprep.mubr.f32.mxu0 0.0
    %369 = vmatmul.mubr.f32.gmra.mrb[0].mxu0 %v139
    %v370 = vpop.f32.mrb[0].mxu0
    %v371 = vadd.f32 0.0, %v370
    %v372 = vpop.f32.mrb[0].mxu0
    %373 = vmatprep.mubr.f32.mxu0 0.0
    %374 = vmatmul.mubr.f32.gmra.mrb[0].mxu0 %v142
    %v375 = vpop.f32.mrb[0].mxu0
    %v376 = vadd.f32 0.0, %v375
    %v377 = vpop.f32.mrb[0].mxu0
    %378 = vmatprep.mubr.f32.mxu0 0.0
    %379 = vmatmul.mubr.f32.gmra.mrb[0].mxu0 %v145
    %v380 = vpop.f32.mrb[0].mxu0
    %v381 = vadd.f32 0.0, %v380
    %v382 = vpop.f32.mrb[0].mxu0
    %383 = vmatprep.mubr.f32.mxu0 0.0
    %384 = vmatmul.mubr.f32.gmra.mrb[0].mxu0 %v148
    %v385 = vpop.f32.mrb[0].mxu0
    %v386 = vadd.f32 0.0, %v385
    %v387 = vpop.f32.mrb[0].mxu0
    %388 = vmatprep.mubr.f32.mxu0 0.0
    %389 = vmatmul.mubr.f32.gmra.mrb[0].mxu0 %v151
    %v390 = vpop.f32.mrb[0].mxu0
    %v391 = vadd.f32 0.0, %v390
    %v392 = vpop.f32.mrb[0].mxu0
    %393 = vmatprep.mubr.f32.mxu0 0.0
    %394 = vmatmul.mubr.f32.gmra.mrb[0].mxu0 %v154
    %v395 = vpop.f32.mrb[0].mxu0
    %v396 = vadd.f32 0.0, %v395
    %v397 = vpop.f32.mrb[0].mxu0
    %398 = vmatprep.mubr.f32.mxu0 0.0
    %399 = vmatmul.mubr.f32.gmra.mrb[0].mxu0 %v157
    %v400 = vpop.f32.mrb[0].mxu0
    %v401 = vadd.f32 0.0, %v400
    %v402 = vpop.f32.mrb[0].mxu0
    %403 = vmatprep.mubr.f32.mxu0 0.0
    %404 = vmatmul.mubr.f32.gmra.mrb[0].mxu0 %v160
    %v405 = vpop.f32.mrb[0].mxu0
    %v406 = vadd.f32 0.0, %v405
    %v407 = vpop.f32.mrb[0].mxu0
    %408 = vmatprep.mubr.f32.mxu0 0.0
    %409 = vmatmul.mubr.f32.gmra.mrb[0].mxu0 %v163
    %v410 = vpop.f32.mrb[0].mxu0
    %v411 = vadd.f32 0.0, %v410
    %v412 = vpop.f32.mrb[0].mxu0
    %413 = vmatprep.mubr.f32.mxu0 0.0
    %414 = vmatmul.mubr.f32.gmra.mrb[0].mxu0 %v166
    %v415 = vpop.f32.mrb[0].mxu0
    %v416 = vadd.f32 0.0, %v415
    %v417 = vpop.f32.mrb[0].mxu0
    %418 = vmatprep.mubr.f32.mxu0 0.0
    %419 = vmatmul.mubr.f32.gmra.mrb[0].mxu0 %v169
    %v420 = vpop.f32.mrb[0].mxu0
    %v421 = vadd.f32 0.0, %v420
    %v422 = vpop.f32.mrb[0].mxu0
    %423 = vmatprep.mubr.f32.mxu0 0.0
    %424 = vmatmul.mubr.f32.gmra.mrb[0].mxu0 %v172
    %v425 = vpop.f32.mrb[0].mxu0
    %v426 = vadd.f32 0.0, %v425
    %v427 = vpop.f32.mrb[0].mxu0
    %428 = vdwg.mxu0
    %vm429 = vcmask 326656
    %430 = vst.msk [vmem:[#allocation2] sm:$0xff] %vm429, %v241
    %431 = vst.msk [vmem:[#allocation2 + $0x8] sm:$0xff] %vm429, %v246
    %432 = vst.msk [vmem:[#allocation2 + $0x10] sm:$0xff] %vm429, %v251
    %433 = vst.msk [vmem:[#allocation2 + $0x18] sm:$0xff] %vm429, %v256
    %434 = vst.msk [vmem:[#allocation2 + $0x20] sm:$0xff] %vm429, %v261
    %435 = vst.msk [vmem:[#allocation2 + $0x28] sm:$0xff] %vm429, %v266
    %436 = vst.msk [vmem:[#allocation2 + $0x30] sm:$0xff] %vm429, %v271
    %437 = vst.msk [vmem:[#allocation2 + $0x38] sm:$0xff] %vm429, %v276
    %438 = vst.msk [vmem:[#allocation2 + $0x40] sm:$0xff] %vm429, %v281
    %439 = vst.msk [vmem:[#allocation2 + $0x48] sm:$0xff] %vm429, %v286
    %440 = vst.msk [vmem:[#allocation2 + $0x50] sm:$0xff] %vm429, %v291
    %441 = vst.msk [vmem:[#allocation2 + $0x58] sm:$0xff] %vm429, %v296
    %442 = vst.msk [vmem:[#allocation2 + $0x60] sm:$0xff] %vm429, %v301
    %443 = vst.msk [vmem:[#allocation2 + $0x68] sm:$0xff] %vm429, %v306
    %444 = vst.msk [vmem:[#allocation2 + $0x70] sm:$0xff] %vm429, %v311
    %445 = vst.msk [vmem:[#allocation2 + $0x78] sm:$0xff] %vm429, %v316
    %446 = vst.msk [vmem:[#allocation2 + $0x80] sm:$0xff] %vm429, %v321
    %447 = vst.msk [vmem:[#allocation2 + $0x88] sm:$0xff] %vm429, %v326
    %448 = vst.msk [vmem:[#allocation2 + $0x90] sm:$0xff] %vm429, %v331
    %449 = vst.msk [vmem:[#allocation2 + $0x98] sm:$0xff] %vm429, %v336
    %450 = vst.msk [vmem:[#allocation2 + $0xa0] sm:$0xff] %vm429, %v341
    %451 = vst.msk [vmem:[#allocation2 + $0xa8] sm:$0xff] %vm429, %v346
    %452 = vst.msk [vmem:[#allocation2 + $0xb0] sm:$0xff] %vm429, %v351
    %453 = vst.msk [vmem:[#allocation2 + $0xb8] sm:$0xff] %vm429, %v356
    %454 = vst.msk [vmem:[#allocation2 + $0xc0] sm:$0xff] %vm429, %v361
    %455 = vst.msk [vmem:[#allocation2 + $0xc8] sm:$0xff] %vm429, %v366
    %456 = vst.msk [vmem:[#allocation2 + $0xd0] sm:$0xff] %vm429, %v371
    %457 = vst.msk [vmem:[#allocation2 + $0xd8] sm:$0xff] %vm429, %v376
    %458 = vst.msk [vmem:[#allocation2 + $0xe0] sm:$0xff] %vm429, %v381
    %459 = vst.msk [vmem:[#allocation2 + $0xe8] sm:$0xff] %vm429, %v386
    %460 = vst.msk [vmem:[#allocation2 + $0xf0] sm:$0xff] %vm429, %v391
    %461 = vst.msk [vmem:[#allocation2 + $0xf8] sm:$0xff] %vm429, %v396
    %462 = vst.msk [vmem:[#allocation2 + $0x100] sm:$0xff] %vm429, %v401
    %463 = vst.msk [vmem:[#allocation2 + $0x108] sm:$0xff] %vm429, %v406
    %464 = vst.msk [vmem:[#allocation2 + $0x110] sm:$0xff] %vm429, %v411
    %465 = vst.msk [vmem:[#allocation2 + $0x118] sm:$0xff] %vm429, %v416
    %466 = vst.msk [vmem:[#allocation2 + $0x120] sm:$0xff] %vm429, %v421
    %vm467 = vcmask 322560
    %468 = vst.msk [vmem:[#allocation2 + $0x128] sm:$0xf] %vm467, %v426
  $region17: #{tpu_custom_call.1} parent=0 // pred_fallthru
    _
  %v469 = vld [vmem:[#allocation2] sm:$0xff]
  %v470 = vld [vmem:[#allocation2 + $0x8] sm:$0xff]
  %v471 = vld [vmem:[#allocation2 + $0x10] sm:$0xff]
  %v472 = vld [vmem:[#allocation2 + $0x18] sm:$0xff]
  %v473 = vld [vmem:[#allocation2 + $0x20] sm:$0xff]
  %v474 = vld [vmem:[#allocation2 + $0x28] sm:$0xff]
  %v475 = vld [vmem:[#allocation2 + $0x30] sm:$0xff]
  %v476 = vld [vmem:[#allocation2 + $0x38] sm:$0xff]
  %v477 = vld [vmem:[#allocation2 + $0x40] sm:$0xff]
  %v478 = vld [vmem:[#allocation2 + $0x48] sm:$0xff]
  %v479 = vld [vmem:[#allocation2 + $0x50] sm:$0xff]
  %v480 = vld [vmem:[#allocation2 + $0x58] sm:$0xff]
  %v481 = vld [vmem:[#allocation2 + $0x60] sm:$0xff]
  %v482 = vld [vmem:[#allocation2 + $0x68] sm:$0xff]
  %v483 = vld [vmem:[#allocation2 + $0x70] sm:$0xff]
  %v484 = vld [vmem:[#allocation2 + $0x78] sm:$0xff]
  %v485 = vld [vmem:[#allocation2 + $0x80] sm:$0xff]
  %v486 = vld [vmem:[#allocation2 + $0x88] sm:$0xff]
  %v487 = vld [vmem:[#allocation2 + $0x90] sm:$0xff]
  %v488 = vld [vmem:[#allocation2 + $0x98] sm:$0xff]
  %v489 = vld [vmem:[#allocation2 + $0xa0] sm:$0xff]
  %v490 = vld [vmem:[#allocation2 + $0xa8] sm:$0xff]
  %v491 = vld [vmem:[#allocation2 + $0xb0] sm:$0xff]
  %v492 = vld [vmem:[#allocation2 + $0xb8] sm:$0xff]
  %v493 = vld [vmem:[#allocation2 + $0xc0] sm:$0xff]
  %v494 = vld [vmem:[#allocation2 + $0xc8] sm:$0xff]
  %v495 = vld [vmem:[#allocation2 + $0xd0] sm:$0xff]
  %v496 = vld [vmem:[#allocation2 + $0xd8] sm:$0xff]
  %v497 = vld [vmem:[#allocation2 + $0xe0] sm:$0xff]
  %v498 = vld [vmem:[#allocation2 + $0xe8] sm:$0xff]
  %v499 = vld [vmem:[#allocation2 + $0xf0] sm:$0xff]
  %v500 = vld [vmem:[#allocation2 + $0xf8] sm:$0xff]
  %v501 = vld [vmem:[#allocation2 + $0x100] sm:$0xff]
  %v502 = vld [vmem:[#allocation2 + $0x108] sm:$0xff]
  %v503 = vld [vmem:[#allocation2 + $0x110] sm:$0xff]
  %v504 = vld [vmem:[#allocation2 + $0x118] sm:$0xff]
  %v505 = vld [vmem:[#allocation2 + $0x120] sm:$0xff]
  %v506 = vld [vmem:[#allocation2 + $0x128] sm:$0xf]
  %v507 = vld [vmem:[%s2] sm:$0xff]
  %v508 = vld [vmem:[%s2 + $0x8] sm:$0xff]
  %v509 = vld [vmem:[%s2 + $0x10] sm:$0xff]
  %v510 = vld [vmem:[%s2 + $0x18] sm:$0xff]
  %v511 = vld [vmem:[%s2 + $0x20] sm:$0xff]
  %v512 = vld [vmem:[%s2 + $0x28] sm:$0xff]
  %v513 = vld [vmem:[%s2 + $0x30] sm:$0xff]
  %v514 = vld [vmem:[%s2 + $0x38] sm:$0xff]
  %v515 = vld [vmem:[%s2 + $0x40] sm:$0xff]
  %v516 = vld [vmem:[%s2 + $0x48] sm:$0xff]
  %vm517 = vcmask 326656
  %v519 = vsel %vm517, %v469, 0
  %v522 = vsel %vm517, %v470, 0
  %v525 = vsel %vm517, %v471, 0
  %v528 = vsel %vm517, %v472, 0
  %v531 = vsel %vm517, %v473, 0
  %v534 = vsel %vm517, %v474, 0
  %v537 = vsel %vm517, %v475, 0
  %v540 = vsel %vm517, %v476, 0
  %v543 = vsel %vm517, %v477, 0
  %v546 = vsel %vm517, %v478, 0
  %v549 = vsel %vm517, %v479, 0
  %v552 = vsel %vm517, %v480, 0
  %v555 = vsel %vm517, %v481, 0
  %v558 = vsel %vm517, %v482, 0
  %v561 = vsel %vm517, %v483, 0
  %v564 = vsel %vm517, %v484, 0
  %v567 = vsel %vm517, %v485, 0
  %v570 = vsel %vm517, %v486, 0
  %v573 = vsel %vm517, %v487, 0
  %v576 = vsel %vm517, %v488, 0
  %v579 = vsel %vm517, %v489, 0
  %v582 = vsel %vm517, %v490, 0
  %v585 = vsel %vm517, %v491, 0
  %v588 = vsel %vm517, %v492, 0
  %v591 = vsel %vm517, %v493, 0
  %v594 = vsel %vm517, %v494, 0
  %v597 = vsel %vm517, %v495, 0
  %v600 = vsel %vm517, %v496, 0
  %v603 = vsel %vm517, %v497, 0
  %v606 = vsel %vm517, %v498, 0
  %v609 = vsel %vm517, %v499, 0
  %v612 = vsel %vm517, %v500, 0
  %v615 = vsel %vm517, %v501, 0
  %v618 = vsel %vm517, %v502, 0
  %v621 = vsel %vm517, %v503, 0
  %v624 = vsel %vm517, %v504, 0
  %v627 = vsel %vm517, %v505, 0
  %v630 = vsel %vm517, %v506, 0
  %632 = vmatprep.subr.mxu0 %v508
  %633 = vmatpush1.msra.mxu0 %v507
  %634 = vmatprep.subr.mxu0 %v510
  %635 = vmatpush1.msra.mxu0 %v509
  %636 = vmatprep.subr.mxu0 %v512
  %637 = vmatpush1.msra.mxu0 %v511
  %638 = vmatprep.subr.mxu0 %v514
  %639 = vmatpush1.msra.mxu0 %v513
  %640 = vmatprep.subr.mxu0 %v516
  %641 = vmatpush1.msra.mxu0 %v515
  %642 = vmatprep.subr.mxu0 0.0
  %643 = vmatpush1.msra.mxu0 0.0
  %644 = vmatprep.subr.mxu0 0.0
  %645 = vmatpush1.msra.mxu0 0.0
  %646 = vmatprep.subr.mxu0 0.0
  %647 = vmatpush1.msra.mxu0 0.0
  %648 = vmatprep.subr.mxu0 0.0
  %649 = vmatpush1.msra.mxu0 0.0
  %650 = vmatprep.subr.mxu0 0.0
  %651 = vmatpush1.msra.mxu0 0.0
  %652 = vmatprep.subr.mxu0 0.0
  %653 = vmatpush1.msra.mxu0 0.0
  %654 = vmatprep.subr.mxu0 0.0
  %655 = vmatpush1.msra.mxu0 0.0
  %656 = vmatprep.subr.mxu0 0.0
  %657 = vmatpush1.msra.mxu0 0.0
  %658 = vmatprep.subr.mxu0 0.0
  %659 = vmatpush1.msra.mxu0 0.0
  %660 = vmatprep.subr.mxu0 0.0
  %661 = vmatpush1.msra.mxu0 0.0
  %662 = vmatprep.subr.mxu0 0.0
  %663 = vmatpush1.msra.mxu0 0.0
  %664 = vmatprep.subr.mxu0 0.0
  %665 = vmatpush1.msra.mxu0 0.0
  %666 = vmatprep.subr.mxu0 0.0
  %667 = vmatpush1.msra.mxu0 0.0
  %668 = vmatprep.subr.mxu0 0.0
  %669 = vmatpush1.msra.mxu0 0.0
  %670 = vmatprep.subr.mxu0 0.0
  %671 = vmatpush1.msra.mxu0 0.0
  %672 = vmatprep.subr.mxu0 0.0
  %673 = vmatpush1.msra.mxu0 0.0
  %674 = vmatprep.subr.mxu0 0.0
  %675 = vmatpush1.msra.mxu0 0.0
  %676 = vmatprep.subr.mxu0 0.0
  %677 = vmatpush1.msra.mxu0 0.0
  %678 = vmatprep.subr.mxu0 0.0
  %679 = vmatpush1.msra.mxu0 0.0
  %680 = vmatprep.subr.mxu0 0.0
  %681 = vmatpush1.msra.mxu0 0.0
  %682 = vmatprep.subr.mxu0 0.0
  %683 = vmatpush1.msra.mxu0 0.0
  %684 = vmatprep.subr.mxu0 0.0
  %685 = vmatpush1.msra.mxu0 0.0
  %686 = vmatprep.subr.mxu0 0.0
  %687 = vmatpush1.msra.mxu0 0.0
  %688 = vmatprep.subr.mxu0 0.0
  %689 = vmatpush1.msra.mxu0 0.0
  %690 = vmatprep.subr.mxu0 0.0
  %691 = vmatpush1.msra.mxu0 0.0
  %692 = vmatprep.subr.mxu0 0.0
  %693 = vmatpush1.msra.mxu0 0.0
  %694 = vmatprep.subr.mxu0 0.0
  %695 = vmatpush1.msra.mxu0 0.0
  %696 = vmatprep.mubr.f32.mxu0 0.0
  %697 = vmatmul.mubr.f32.gmra.mrb[0].mxu0 %v519
  %v698 = vpop.f32.mrb[0].mxu0
  %v699 = vadd.f32 0.0, %v698
  %v700 = vpop.f32.mrb[0].mxu0
  %v701 = vadd.f32 0.0, %v700
  %702 = vmatprep.mubr.f32.mxu0 0.0
  %703 = vmatmul.mubr.f32.gmra.mrb[0].mxu0 %v522
  %v704 = vpop.f32.mrb[0].mxu0
  %v705 = vadd.f32 0.0, %v704
  %v706 = vpop.f32.mrb[0].mxu0
  %v707 = vadd.f32 0.0, %v706
  %708 = vmatprep.mubr.f32.mxu0 0.0
  %709 = vmatmul.mubr.f32.gmra.mrb[0].mxu0 %v525
  %v710 = vpop.f32.mrb[0].mxu0
  %v711 = vadd.f32 0.0, %v710
  %v712 = vpop.f32.mrb[0].mxu0
  %v713 = vadd.f32 0.0, %v712
  %714 = vmatprep.mubr.f32.mxu0 0.0
  %715 = vmatmul.mubr.f32.gmra.mrb[0].mxu0 %v528
  %v716 = vpop.f32.mrb[0].mxu0
  %v717 = vadd.f32 0.0, %v716
  %v718 = vpop.f32.mrb[0].mxu0
  %v719 = vadd.f32 0.0, %v718
  %720 = vmatprep.mubr.f32.mxu0 0.0
  %721 = vmatmul.mubr.f32.gmra.mrb[0].mxu0 %v531
  %v722 = vpop.f32.mrb[0].mxu0
  %v723 = vadd.f32 0.0, %v722
  %v724 = vpop.f32.mrb[0].mxu0
  %v725 = vadd.f32 0.0, %v724
  %726 = vmatprep.mubr.f32.mxu0 0.0
  %727 = vmatmul.mubr.f32.gmra.mrb[0].mxu0 %v534
  %v728 = vpop.f32.mrb[0].mxu0
  %v729 = vadd.f32 0.0, %v728
  %v730 = vpop.f32.mrb[0].mxu0
  %v731 = vadd.f32 0.0, %v730
  %732 = vmatprep.mubr.f32.mxu0 0.0
  %733 = vmatmul.mubr.f32.gmra.mrb[0].mxu0 %v537
  %v734 = vpop.f32.mrb[0].mxu0
  %v735 = vadd.f32 0.0, %v734
  %v736 = vpop.f32.mrb[0].mxu0
  %v737 = vadd.f32 0.0, %v736
  %738 = vmatprep.mubr.f32.mxu0 0.0
  %739 = vmatmul.mubr.f32.gmra.mrb[0].mxu0 %v540
  %v740 = vpop.f32.mrb[0].mxu0
  %v741 = vadd.f32 0.0, %v740
  %v742 = vpop.f32.mrb[0].mxu0
  %v743 = vadd.f32 0.0, %v742
  %744 = vmatprep.mubr.f32.mxu0 0.0
  %745 = vmatmul.mubr.f32.gmra.mrb[0].mxu0 %v543
  %v746 = vpop.f32.mrb[0].mxu0
  %v747 = vadd.f32 0.0, %v746
  %v748 = vpop.f32.mrb[0].mxu0
  %v749 = vadd.f32 0.0, %v748
  %750 = vmatprep.mubr.f32.mxu0 0.0
  %751 = vmatmul.mubr.f32.gmra.mrb[0].mxu0 %v546
  %v752 = vpop.f32.mrb[0].mxu0
  %v753 = vadd.f32 0.0, %v752
  %v754 = vpop.f32.mrb[0].mxu0
  %v755 = vadd.f32 0.0, %v754
  %756 = vmatprep.mubr.f32.mxu0 0.0
  %757 = vmatmul.mubr.f32.gmra.mrb[0].mxu0 %v549
  %v758 = vpop.f32.mrb[0].mxu0
  %v759 = vadd.f32 0.0, %v758
  %v760 = vpop.f32.mrb[0].mxu0
  %v761 = vadd.f32 0.0, %v760
  %762 = vmatprep.mubr.f32.mxu0 0.0
  %763 = vmatmul.mubr.f32.gmra.mrb[0].mxu0 %v552
  %v764 = vpop.f32.mrb[0].mxu0
  %v765 = vadd.f32 0.0, %v764
  %v766 = vpop.f32.mrb[0].mxu0
  %v767 = vadd.f32 0.0, %v766
  %768 = vmatprep.mubr.f32.mxu0 0.0
  %769 = vmatmul.mubr.f32.gmra.mrb[0].mxu0 %v555
  %v770 = vpop.f32.mrb[0].mxu0
  %v771 = vadd.f32 0.0, %v770
  %v772 = vpop.f32.mrb[0].mxu0
  %v773 = vadd.f32 0.0, %v772
  %774 = vmatprep.mubr.f32.mxu0 0.0
  %775 = vmatmul.mubr.f32.gmra.mrb[0].mxu0 %v558
  %v776 = vpop.f32.mrb[0].mxu0
  %v777 = vadd.f32 0.0, %v776
  %v778 = vpop.f32.mrb[0].mxu0
  %v779 = vadd.f32 0.0, %v778
  %780 = vmatprep.mubr.f32.mxu0 0.0
  %781 = vmatmul.mubr.f32.gmra.mrb[0].mxu0 %v561
  %v782 = vpop.f32.mrb[0].mxu0
  %v783 = vadd.f32 0.0, %v782
  %v784 = vpop.f32.mrb[0].mxu0
  %v785 = vadd.f32 0.0, %v784
  %786 = vmatprep.mubr.f32.mxu0 0.0
  %787 = vmatmul.mubr.f32.gmra.mrb[0].mxu0 %v564
  %v788 = vpop.f32.mrb[0].mxu0
  %v789 = vadd.f32 0.0, %v788
  %v790 = vpop.f32.mrb[0].mxu0
  %v791 = vadd.f32 0.0, %v790
  %792 = vmatprep.mubr.f32.mxu0 0.0
  %793 = vmatmul.mubr.f32.gmra.mrb[0].mxu0 %v567
  %v794 = vpop.f32.mrb[0].mxu0
  %v795 = vadd.f32 0.0, %v794
  %v796 = vpop.f32.mrb[0].mxu0
  %v797 = vadd.f32 0.0, %v796
  %798 = vmatprep.mubr.f32.mxu0 0.0
  %799 = vmatmul.mubr.f32.gmra.mrb[0].mxu0 %v570
  %v800 = vpop.f32.mrb[0].mxu0
  %v801 = vadd.f32 0.0, %v800
  %v802 = vpop.f32.mrb[0].mxu0
  %v803 = vadd.f32 0.0, %v802
  %804 = vmatprep.mubr.f32.mxu0 0.0
  %805 = vmatmul.mubr.f32.gmra.mrb[0].mxu0 %v573
  %v806 = vpop.f32.mrb[0].mxu0
  %v807 = vadd.f32 0.0, %v806
  %v808 = vpop.f32.mrb[0].mxu0
  %v809 = vadd.f32 0.0, %v808
  %810 = vmatprep.mubr.f32.mxu0 0.0
  %811 = vmatmul.mubr.f32.gmra.mrb[0].mxu0 %v576
  %v812 = vpop.f32.mrb[0].mxu0
  %v813 = vadd.f32 0.0, %v812
  %v814 = vpop.f32.mrb[0].mxu0
  %v815 = vadd.f32 0.0, %v814
  %816 = vmatprep.mubr.f32.mxu0 0.0
  %817 = vmatmul.mubr.f32.gmra.mrb[0].mxu0 %v579
  %v818 = vpop.f32.mrb[0].mxu0
  %v819 = vadd.f32 0.0, %v818
  %v820 = vpop.f32.mrb[0].mxu0
  %v821 = vadd.f32 0.0, %v820
  %822 = vmatprep.mubr.f32.mxu0 0.0
  %823 = vmatmul.mubr.f32.gmra.mrb[0].mxu0 %v582
  %v824 = vpop.f32.mrb[0].mxu0
  %v825 = vadd.f32 0.0, %v824
  %v826 = vpop.f32.mrb[0].mxu0
  %v827 = vadd.f32 0.0, %v826
  %828 = vmatprep.mubr.f32.mxu0 0.0
  %829 = vmatmul.mubr.f32.gmra.mrb[0].mxu0 %v585
  %v830 = vpop.f32.mrb[0].mxu0
  %v831 = vadd.f32 0.0, %v830
  %v832 = vpop.f32.mrb[0].mxu0
  %v833 = vadd.f32 0.0, %v832
  %834 = vmatprep.mubr.f32.mxu0 0.0
  %835 = vmatmul.mubr.f32.gmra.mrb[0].mxu0 %v588
  %v836 = vpop.f32.mrb[0].mxu0
  %v837 = vadd.f32 0.0, %v836
  %v838 = vpop.f32.mrb[0].mxu0
  %v839 = vadd.f32 0.0, %v838
  %840 = vmatprep.mubr.f32.mxu0 0.0
  %841 = vmatmul.mubr.f32.gmra.mrb[0].mxu0 %v591
  %v842 = vpop.f32.mrb[0].mxu0
  %v843 = vadd.f32 0.0, %v842
  %v844 = vpop.f32.mrb[0].mxu0
  %v845 = vadd.f32 0.0, %v844
  %846 = vmatprep.mubr.f32.mxu0 0.0
  %847 = vmatmul.mubr.f32.gmra.mrb[0].mxu0 %v594
  %v848 = vpop.f32.mrb[0].mxu0
  %v849 = vadd.f32 0.0, %v848
  %v850 = vpop.f32.mrb[0].mxu0
  %v851 = vadd.f32 0.0, %v850
  %852 = vmatprep.mubr.f32.mxu0 0.0
  %853 = vmatmul.mubr.f32.gmra.mrb[0].mxu0 %v597
  %v854 = vpop.f32.mrb[0].mxu0
  %v855 = vadd.f32 0.0, %v854
  %v856 = vpop.f32.mrb[0].mxu0
  %v857 = vadd.f32 0.0, %v856
  %858 = vmatprep.mubr.f32.mxu0 0.0
  %859 = vmatmul.mubr.f32.gmra.mrb[0].mxu0 %v600
  %v860 = vpop.f32.mrb[0].mxu0
  %v861 = vadd.f32 0.0, %v860
  %v862 = vpop.f32.mrb[0].mxu0
  %v863 = vadd.f32 0.0, %v862
  %864 = vmatprep.mubr.f32.mxu0 0.0
  %865 = vmatmul.mubr.f32.gmra.mrb[0].mxu0 %v603
  %v866 = vpop.f32.mrb[0].mxu0
  %v867 = vadd.f32 0.0, %v866
  %v868 = vpop.f32.mrb[0].mxu0
  %v869 = vadd.f32 0.0, %v868
  %870 = vmatprep.mubr.f32.mxu0 0.0
  %871 = vmatmul.mubr.f32.gmra.mrb[0].mxu0 %v606
  %v872 = vpop.f32.mrb[0].mxu0
  %v873 = vadd.f32 0.0, %v872
  %v874 = vpop.f32.mrb[0].mxu0
  %v875 = vadd.f32 0.0, %v874
  %876 = vmatprep.mubr.f32.mxu0 0.0
  %877 = vmatmul.mubr.f32.gmra.mrb[0].mxu0 %v609
  %v878 = vpop.f32.mrb[0].mxu0
  %v879 = vadd.f32 0.0, %v878
  %v880 = vpop.f32.mrb[0].mxu0
  %v881 = vadd.f32 0.0, %v880
  %882 = vmatprep.mubr.f32.mxu0 0.0
  %883 = vmatmul.mubr.f32.gmra.mrb[0].mxu0 %v612
  %v884 = vpop.f32.mrb[0].mxu0
  %v885 = vadd.f32 0.0, %v884
  %v886 = vpop.f32.mrb[0].mxu0
  %v887 = vadd.f32 0.0, %v886
  %888 = vmatprep.mubr.f32.mxu0 0.0
  %889 = vmatmul.mubr.f32.gmra.mrb[0].mxu0 %v615
  %v890 = vpop.f32.mrb[0].mxu0
  %v891 = vadd.f32 0.0, %v890
  %v892 = vpop.f32.mrb[0].mxu0
  %v893 = vadd.f32 0.0, %v892
  %894 = vmatprep.mubr.f32.mxu0 0.0
  %895 = vmatmul.mubr.f32.gmra.mrb[0].mxu0 %v618
  %v896 = vpop.f32.mrb[0].mxu0
  %v897 = vadd.f32 0.0, %v896
  %v898 = vpop.f32.mrb[0].mxu0
  %v899 = vadd.f32 0.0, %v898
  %900 = vmatprep.mubr.f32.mxu0 0.0
  %901 = vmatmul.mubr.f32.gmra.mrb[0].mxu0 %v621
  %v902 = vpop.f32.mrb[0].mxu0
  %v903 = vadd.f32 0.0, %v902
  %v904 = vpop.f32.mrb[0].mxu0
  %v905 = vadd.f32 0.0, %v904
  %906 = vmatprep.mubr.f32.mxu0 0.0
  %907 = vmatmul.mubr.f32.gmra.mrb[0].mxu0 %v624
  %v908 = vpop.f32.mrb[0].mxu0
  %v909 = vadd.f32 0.0, %v908
  %v910 = vpop.f32.mrb[0].mxu0
  %v911 = vadd.f32 0.0, %v910
  %912 = vmatprep.mubr.f32.mxu0 0.0
  %913 = vmatmul.mubr.f32.gmra.mrb[0].mxu0 %v627
  %v914 = vpop.f32.mrb[0].mxu0
  %v915 = vadd.f32 0.0, %v914
  %v916 = vpop.f32.mrb[0].mxu0
  %v917 = vadd.f32 0.0, %v916
  %918 = vmatprep.mubr.f32.mxu0 0.0
  %919 = vmatmul.mubr.f32.gmra.mrb[0].mxu0 %v630
  %v920 = vpop.f32.mrb[0].mxu0
  %v921 = vadd.f32 0.0, %v920
  %v922 = vpop.f32.mrb[0].mxu0
  %v923 = vadd.f32 0.0, %v922
  %924 = vdwg.mxu0
  %925 = vst [vmem:[%s3] sm:$0xff] %v699
  %vm926 = vcmask 588800
  %927 = vst.msk [vmem:[%s3 + $0x8] sm:$0xff] %vm926, %v701
  %928 = vst [vmem:[%s3 + $0x10] sm:$0xff] %v705
  %929 = vst.msk [vmem:[%s3 + $0x18] sm:$0xff] %vm926, %v707
  %930 = vst [vmem:[%s3 + $0x20] sm:$0xff] %v711
  %931 = vst.msk [vmem:[%s3 + $0x28] sm:$0xff] %vm926, %v713
  %932 = vst [vmem:[%s3 + $0x30] sm:$0xff] %v717
  %933 = vst.msk [vmem:[%s3 + $0x38] sm:$0xff] %vm926, %v719
  %934 = vst [vmem:[%s3 + $0x40] sm:$0xff] %v723
  %935 = vst.msk [vmem:[%s3 + $0x48] sm:$0xff] %vm926, %v725
  %936 = vst [vmem:[%s3 + $0x50] sm:$0xff] %v729
  %937 = vst.msk [vmem:[%s3 + $0x58] sm:$0xff] %vm926, %v731
  %938 = vst [vmem:[%s3 + $0x60] sm:$0xff] %v735
  %939 = vst.msk [vmem:[%s3 + $0x68] sm:$0xff] %vm926, %v737
  %940 = vst [vmem:[%s3 + $0x70] sm:$0xff] %v741
  %941 = vst.msk [vmem:[%s3 + $0x78] sm:$0xff] %vm926, %v743
  %942 = vst [vmem:[%s3 + $0x80] sm:$0xff] %v747
  %943 = vst.msk [vmem:[%s3 + $0x88] sm:$0xff] %vm926, %v749
  %944 = vst [vmem:[%s3 + $0x90] sm:$0xff] %v753
  %945 = vst.msk [vmem:[%s3 + $0x98] sm:$0xff] %vm926, %v755
  %946 = vst [vmem:[%s3 + $0xa0] sm:$0xff] %v759
  %947 = vst.msk [vmem:[%s3 + $0xa8] sm:$0xff] %vm926, %v761
  %948 = vst [vmem:[%s3 + $0xb0] sm:$0xff] %v765
  %949 = vst.msk [vmem:[%s3 + $0xb8] sm:$0xff] %vm926, %v767
  %950 = vst [vmem:[%s3 + $0xc0] sm:$0xff] %v771
  %951 = vst.msk [vmem:[%s3 + $0xc8] sm:$0xff] %vm926, %v773
  %952 = vst [vmem:[%s3 + $0xd0] sm:$0xff] %v777
  %953 = vst.msk [vmem:[%s3 + $0xd8] sm:$0xff] %vm926, %v779
  %954 = vst [vmem:[%s3 + $0xe0] sm:$0xff] %v783
  %955 = vst.msk [vmem:[%s3 + $0xe8] sm:$0xff] %vm926, %v785
  %956 = vst [vmem:[%s3 + $0xf0] sm:$0xff] %v789
  %957 = vst.msk [vmem:[%s3 + $0xf8] sm:$0xff] %vm926, %v791
  %958 = vst [vmem:[%s3 + $0x100] sm:$0xff] %v795
  %959 = vst.msk [vmem:[%s3 + $0x108] sm:$0xff] %vm926, %v797
  %960 = vst [vmem:[%s3 + $0x110] sm:$0xff] %v801
  %961 = vst.msk [vmem:[%s3 + $0x118] sm:$0xff] %vm926, %v803
  %962 = vst [vmem:[%s3 + $0x120] sm:$0xff] %v807
  %963 = vst.msk [vmem:[%s3 + $0x128] sm:$0xff] %vm926, %v809
  %964 = vst [vmem:[%s3 + $0x130] sm:$0xff] %v813
  %965 = vst.msk [vmem:[%s3 + $0x138] sm:$0xff] %vm926, %v815
  %966 = vst [vmem:[%s3 + $0x140] sm:$0xff] %v819
  %967 = vst.msk [vmem:[%s3 + $0x148] sm:$0xff] %vm926, %v821
  %968 = vst [vmem:[%s3 + $0x150] sm:$0xff] %v825
  %969 = vst.msk [vmem:[%s3 + $0x158] sm:$0xff] %vm926, %v827
  %970 = vst [vmem:[%s3 + $0x160] sm:$0xff] %v831
  %971 = vst.msk [vmem:[%s3 + $0x168] sm:$0xff] %vm926, %v833
  %972 = vst [vmem:[%s3 + $0x170] sm:$0xff] %v837
  %973 = vst.msk [vmem:[%s3 + $0x178] sm:$0xff] %vm926, %v839
  %974 = vst [vmem:[%s3 + $0x180] sm:$0xff] %v843
  %975 = vst.msk [vmem:[%s3 + $0x188] sm:$0xff] %vm926, %v845
  %976 = vst [vmem:[%s3 + $0x190] sm:$0xff] %v849
  %977 = vst.msk [vmem:[%s3 + $0x198] sm:$0xff] %vm926, %v851
  %978 = vst [vmem:[%s3 + $0x1a0] sm:$0xff] %v855
  %979 = vst.msk [vmem:[%s3 + $0x1a8] sm:$0xff] %vm926, %v857
  %980 = vst [vmem:[%s3 + $0x1b0] sm:$0xff] %v861
  %981 = vst.msk [vmem:[%s3 + $0x1b8] sm:$0xff] %vm926, %v863
  %982 = vst [vmem:[%s3 + $0x1c0] sm:$0xff] %v867
  %983 = vst.msk [vmem:[%s3 + $0x1c8] sm:$0xff] %vm926, %v869
  %984 = vst [vmem:[%s3 + $0x1d0] sm:$0xff] %v873
  %985 = vst.msk [vmem:[%s3 + $0x1d8] sm:$0xff] %vm926, %v875
  %986 = vst [vmem:[%s3 + $0x1e0] sm:$0xff] %v879
  %987 = vst.msk [vmem:[%s3 + $0x1e8] sm:$0xff] %vm926, %v881
  %988 = vst [vmem:[%s3 + $0x1f0] sm:$0xff] %v885
  %989 = vst.msk [vmem:[%s3 + $0x1f8] sm:$0xff] %vm926, %v887
  %990 = vst [vmem:[%s3 + $0x200] sm:$0xff] %v891
  %991 = vst.msk [vmem:[%s3 + $0x208] sm:$0xff] %vm926, %v893
  %992 = vst [vmem:[%s3 + $0x210] sm:$0xff] %v897
  %993 = vst.msk [vmem:[%s3 + $0x218] sm:$0xff] %vm926, %v899
  %994 = vst [vmem:[%s3 + $0x220] sm:$0xff] %v903
  %995 = vst.msk [vmem:[%s3 + $0x228] sm:$0xff] %vm926, %v905
  %996 = vst [vmem:[%s3 + $0x230] sm:$0xff] %v909
  %997 = vst.msk [vmem:[%s3 + $0x238] sm:$0xff] %vm926, %v911
  %998 = vst [vmem:[%s3 + $0x240] sm:$0xff] %v915
  %999 = vst.msk [vmem:[%s3 + $0x248] sm:$0xff] %vm926, %v917
  %1000 = vst [vmem:[%s3 + $0x250] sm:$0xf] %v921
  %vm1001 = vcmask 584704
  %1002 = vst.msk [vmem:[%s3 + $0x258] sm:$0xf] %vm1001, %v923
  // Predicated region
  $region18: #{tpu_custom_call.1} parent=0 // pred_check
    _
  $region19: #{tpu_custom_call.1} parent=0 // pred_check_branch
    %1004 = sbr.rel (0) target = $region21
  $region20: #{tpu_custom_call.1} parent=0 // pred_region
    _
  $region21: #{tpu_custom_call.1} parent=0 // pred_fallthru
    _
  // Predicated region
  $region22: #{tpu_custom_call.1} parent=0 // pred_check
    _
  $region23: #{tpu_custom_call.1} parent=0 // pred_check_branch
    %1006 = sbr.rel (0) target = $region25
  $region24: #{tpu_custom_call.1} parent=0 // pred_region
    _
  $region25: #{tpu_custom_call.1} parent=0 // pred_fallthru
    _

</llo_original>
